<compile_context>
chip_gen: v7x
topology: tpu7x:2x2x1
jax: 0.10.0
libtpu: 0.0.40
codegen_flags: <defaults>
</compile_context>

<pallas_src>
import math

import jax
import jax.numpy as jnp
import numpy as np
from jax import lax
from jax.experimental import pallas as pl
from jax.experimental.pallas import tpu as pltpu


def _round_up(x, m):
    return ((x + m - 1) // m) * m


def _vmem_budget_bytes():
    """~75% of per-core VMEM; conservative 64 MiB (v7x) fallback if query fails."""
    cap = 64 << 20
    try:
        info = pltpu.get_tpu_info()
        cap = int(getattr(info, "vmem_capacity_bytes", cap)) or cap
    except Exception:
        pass
    return (cap // 4) * 3


def _pick_row_fold(c_z, num_bins, max_fold=8):
    """Smallest fold r making r*c_z and r*num_bins multiples of 128 (lane-dense I/O)."""
    r_in = 128 // math.gcd(c_z, 128)
    r_out = 128 // math.gcd(num_bins, 128)
    return min(max(r_in, r_out), max_fold)


def _make_split_k_kernel(r, c_z, precision):
    """r small matmuls against the original weight + lane concat (no zero-padded MACs)."""

    def kernel(z_ref, w_ref, b_ref, o_ref):
        # z_ref: (tm, r*c_z)  w_ref: (c_z, nb)  b_ref: (1, nb)  o_ref: (tm, r*nb)
        w = w_ref[...]
        b = b_ref[...].astype(jnp.float32)
        parts = []
        for j in range(r):                                   # unrolled, r <= 8
            xj = z_ref[:, pl.ds(j * c_z, c_z)]               # lane slice of folded row
            parts.append(
                jnp.dot(xj, w, preferred_element_type=jnp.float32,
                        precision=precision) + b)
        acc = parts[0] if r == 1 else jnp.concatenate(parts, axis=-1)
        o_ref[...] = acc.astype(o_ref.dtype)

    return kernel


def _make_block_diag_kernel(precision):
    """Single matmul against kron(I_r, W): r x more MXU work, kept only as a fallback."""

    def kernel(z_ref, w_ref, b_ref, o_ref):
        acc = jnp.dot(z_ref[...], w_ref[...], preferred_element_type=jnp.float32,
                      precision=precision)
        o_ref[...] = (acc + b_ref[...].astype(jnp.float32)).astype(o_ref.dtype)

    return kernel


def tm_score_head_forward(z, weight, bias, *, tm=8192,
                          precision=lax.Precision.HIGH,
                          use_block_diag_weight=False):
    """Pallas forward of TMScoreHead.

    Args:
        z: [..., c_z] pair representation (channels-last, contiguous).
        weight: [c_z, num_bins] (transposed copy of the PyTorch [num_bins, c_z] weight).
        bias: [num_bins].
        tm: requested row tile of the folded (M/r, r*c_z) view; clamped to the VMEM budget.
        precision: MXU precision (HIGH = bf16x3, f32-accurate and memory-bound on v5e).
        use_block_diag_weight: compatibility fallback using kron(I_r, W).
    Returns:
        logits: [..., num_bins], same dtype as z.
    """
    orig_shape = z.shape
    c_z = int(orig_shape[-1])
    num_bins = int(weight.shape[1])
    M = int(np.prod(orig_shape[:-1])) if len(orig_shape) > 1 else 1
    out_dtype = z.dtype

    # ---- lane-dense row folding (pad up to a multiple of r, never drop the fold) ----
    r = _pick_row_fold(c_z, num_bins)
    Kf, Nf = r * c_z, r * num_bins
    M_pad = _round_up(M, r)
    z_flat = z.reshape(M, c_z)
    if M_pad != M:
        z_flat = jnp.pad(z_flat, ((0, M_pad - M), (0, 0)))
    M_rows = M_pad // r
    z2 = z_flat.reshape(M_rows, Kf)  # row-major reinterpretation (no copy when unpadded)

    if use_block_diag_weight:
        w_in = jnp.kron(jnp.eye(r, dtype=weight.dtype), weight)       # (Kf, Nf)
        b_in = jnp.tile(bias, r).reshape(1, Nf)
        kernel = _make_block_diag_kernel(precision)
        flops = 2 * M_rows * Kf * Nf            # what this formulation actually emits
    else:
        w_in = weight                                                  # (c_z, num_bins)
        b_in = bias.reshape(1, num_bins)
        kernel = _make_split_k_kernel(r, c_z, precision)
        flops = 2 * M_pad * c_z * num_bins      # true FLOPs, matches emitted matmuls

    in_item = jnp.dtype(z2.dtype).itemsize
    out_item = jnp.dtype(out_dtype).itemsize
    w_bytes = w_in.size * jnp.dtype(w_in.dtype).itemsize
    b_bytes = b_in.size * jnp.dtype(b_in.dtype).itemsize

    # ---- generation-aware tiling / VMEM budget ----
    budget = _vmem_budget_bytes()

    def tile_need(t):  # double-buffered z/out tiles + (double-buffered) weight & bias + margin
        return 2 * t * (Kf * in_item + Nf * out_item) + 2 * (w_bytes + b_bytes) + (2 << 20)

    if M_rows < 16:
        tm_eff = M_rows                          # single full-extent block (tiny input)
    else:
        tm_eff = max(8, (min(tm, M_rows) // 8) * 8)
        while tile_need(tm_eff) > budget and tm_eff > 256:
            tm_eff = max(256, tm_eff // 2)
        if pl.cdiv(M_rows, tm_eff) < 2:
            # >= 2 grid steps: lets ("parallel",) shard across both v7x TensorCores
            # and restores DMA/compute pipelining on medium-sized inputs.
            tm_eff = max(8, _round_up(pl.cdiv(M_rows, 2), 8))
    grid = pl.cdiv(M_rows, tm_eff)

    vmem_limit = int(min(budget, max(tile_need(tm_eff) + (8 << 20), 16 << 20)))

    cost = pl.CostEstimate(
        flops=int(flops),
        transcendentals=0,
        bytes_accessed=int(M_pad * c_z * in_item + M_pad * num_bins * out_item
                           + w_bytes + b_bytes),
    )

    out2 = pl.pallas_call(
        kernel,
        out_shape=jax.ShapeDtypeStruct((M_rows, Nf), out_dtype),
        grid_spec=pltpu.PrefetchScalarGridSpec(
            num_scalar_prefetch=0,
            grid=(grid,),
            in_specs=[
                pl.BlockSpec((tm_eff, Kf), lambda i: (i, 0)),
                pl.BlockSpec(w_in.shape, lambda i: (0, 0)),   # fetched once
                pl.BlockSpec(b_in.shape, lambda i: (0, 0)),   # fetched once
            ],
            out_specs=pl.BlockSpec((tm_eff, Nf), lambda i: (i, 0)),
        ),
        compiler_params=pltpu.CompilerParams(
            dimension_semantics=("parallel",),
            vmem_limit_bytes=vmem_limit,
        ),
        cost_estimate=cost,
    )(z2, w_in, b_in)

    # (M_pad/r, r*num_bins) row-major == (M_pad, num_bins) row-major.
    out_flat = out2.reshape(M_pad, num_bins)
    if M_pad != M:
        out_flat = out_flat[:M]
    return out_flat.reshape(orig_shape[:-1] + (num_bins,))


if __name__ == "__main__":
    # Module hyper-params (OpenFold TM-score head: c_z=128, num_bins=64).
    c_z, num_bins, max_bin = 128, 64, 31  # max_bin only parameterizes downstream bin edges.

    key = jax.random.PRNGKey(0)
    k_w, k_b, k_z = jax.random.split(key, 3)
    # NOTE: OpenFold uses init='final' (zeros) for this Linear; small deterministic
    # random values are used here so the kernel output is non-trivial.
    weight = jax.random.normal(k_w, (c_z, num_bins), dtype=jnp.float32) * 0.02
    bias = jax.random.normal(k_b, (num_bins,), dtype=jnp.float32) * 0.01

    # Example pair representation z: [batch, N_res, N_res, c_z] (small shapes).
    batch, n_res = 2, 8
    z = jax.random.normal(k_z, (batch, n_res, n_res, c_z), dtype=jnp.float32)

    try:
        logits = jax.block_until_ready(tm_score_head_forward(z, weight, bias))
    except Exception:
        # Escape hatch: proven block-diagonal formulation (same math, more MXU work).
        logits = jax.block_until_ready(
            tm_score_head_forward(z, weight, bias, use_block_diag_weight=True,
                                  precision=lax.Precision.HIGHEST))

    # Reference check (same math as torch.nn.Linear forward).
    ref = jnp.einsum("...c,cn->...n", z, weight,
                     precision=lax.Precision.HIGHEST) + bias
    assert logits.shape == (batch, n_res, n_res, num_bins)
    np.testing.assert_allclose(np.asarray(logits), np.asarray(ref), rtol=1e-5, atol=1e-5)

    print("KERNEL_OK")
</pallas_src>

<mosaic_0001>
module attributes {stable_mosaic.version = 11 : i64} {
  func.func @kernel(%arg0: i32, %arg1: memref<32x256xf32, #tpu.memory_space<vmem>>, %arg2: memref<256x128xf32, #tpu.memory_space<vmem>>, %arg3: memref<1x128xf32, #tpu.memory_space<vmem>>, %arg4: memref<32x128xf32, #tpu.memory_space<vmem>>) attributes {dimension_semantics = [#tpu.dimension_semantics<parallel>], iteration_bounds = array<i64: 2>, scalar_prefetch = 0 : i64, scratch_operands = 0 : i64, tpu.core_type = #tpu.core_type<tc>, window_params = [{transform_indices = @transform_0, window_bounds = array<i64: 32, 256>}, {pipeline_mode = #tpu.pipeline_mode<synchronous>, transform_indices = @transform_1, window_bounds = array<i64: 256, 128>}, {pipeline_mode = #tpu.pipeline_mode<synchronous>, transform_indices = @transform_2, window_bounds = array<i64: 1, 128>}, {transform_indices = @transform_3, window_bounds = array<i64: 32, 128>}]} {
    %c0 = arith.constant 0 : index
    %c0_0 = arith.constant 0 : index
    %0 = vector.load %arg1[%c0, %c0_0] : memref<32x256xf32, #tpu.memory_space<vmem>>, vector<32x256xf32>
    %c0_1 = arith.constant 0 : index
    %c0_2 = arith.constant 0 : index
    %1 = vector.load %arg2[%c0_1, %c0_2] : memref<256x128xf32, #tpu.memory_space<vmem>>, vector<256x128xf32>
    %cst = arith.constant dense<0.000000e+00> : vector<32x128xf32>
    %2 = tpu.matmul %0, %1, %cst {dimension_numbers = #tpu.dot_dimension_numbers<[1], [0], [0], [1], [0, 0, 1, 1], [], []>, precision = #tpu.contract_precision<fp32>} : vector<32x256xf32>, vector<256x128xf32>, vector<32x128xf32> -> vector<32x128xf32>
    %c0_3 = arith.constant 0 : index
    %c0_4 = arith.constant 0 : index
    %3 = vector.load %arg3[%c0_3, %c0_4] : memref<1x128xf32, #tpu.memory_space<vmem>>, vector<1x128xf32>
    %4 = vector.broadcast %3 : vector<1x128xf32> to vector<32x128xf32>
    %5 = arith.addf %2, %4 : vector<32x128xf32>
    %c0_5 = arith.constant 0 : index
    %c0_6 = arith.constant 0 : index
    %6 = vector.load %arg4[%c0_5, %c0_6] : memref<32x128xf32, #tpu.memory_space<vmem>>, vector<32x128xf32>
    tpu.vector_store %arg4[%c0_5, %c0_6], %5 {strides = array<i32>} : memref<32x128xf32, #tpu.memory_space<vmem>>, vector<32x128xf32>,
    return
  }
  func.func @transform_0(%arg0: i32) -> (i32, i32) {
    %c0_i32 = arith.constant 0 : i32
    %c0_i32_0 = arith.constant 0 : i32
    return %arg0, %c0_i32 : i32, i32
  }
  func.func @transform_1(%arg0: i32) -> (i32, i32) {
    %c0_i32 = arith.constant 0 : i32
    %c0_i32_0 = arith.constant 0 : i32
    %c0_i32_1 = arith.constant 0 : i32
    return %c0_i32, %c0_i32_0 : i32, i32
  }
  func.func @transform_2(%arg0: i32) -> (i32, i32) {
    %c0_i32 = arith.constant 0 : i32
    %c0_i32_0 = arith.constant 0 : i32
    %c0_i32_1 = arith.constant 0 : i32
    return %c0_i32, %c0_i32_0 : i32, i32
  }
  func.func @transform_3(%arg0: i32) -> (i32, i32) {
    %c0_i32 = arith.constant 0 : i32
    %c0_i32_0 = arith.constant 0 : i32
    return %arg0, %c0_i32 : i32, i32
  }
}

</mosaic_0001>

<llo_original>
// kernel: tpu_custom_call.1
$region0: #{tpu_custom_call.1}
  #allocation0 [shape = 'u32[]', space=smem, size = 0x4, offset = 0x4, fixed_abs, tag = 'smem constant byte address 0x4 - core index']
  #allocation1 [shape = 'u32[144,128]{1,0:T(1,128)}', space=vmem, size = 0x12000, scoped, tag = 'internal scratch']
  %s0 = inlined_call_operand.hbm [shape: f32[64,256], index: 0, kind: input, shape index: {}]
  %s1 = inlined_call_operand.hbm [shape: f32[256,128], index: 1, kind: input, shape index: {}]
  %s2 = inlined_call_operand.vmem [shape: f32[1,128], index: 2, kind: input, shape index: {}]
  %s3 = inlined_call_operand.hbm [shape: f32[64,128], index: 3, kind: output, shape index: {}]
  %s4 = sld [smem:[#allocation0]]
  $region53: #{tpu_custom_call.1} parent=0
    _
  %s6 = ssub.s32 1, %s4
  %s7 = scalar_select 0, %s6, %s4
  $region1: #{tpu_custom_call.1} parent=0
    #allocation2 [shape = 'u8[65536]{0}', space=vmem, size = 0x10000, scoped, tag = 'input window, operand 0']
    #allocation3 [shape = 's32[2]{0}', space=sflag, size = 0x8, scoped, tag = 'scoped memory for tpu_custom_call.1']
    #allocation4 [shape = 's32[2]{0}', space=sflag, size = 0x8, scoped, tag = 'scoped memory for tpu_custom_call.1']
    #allocation5 [shape = 'u8[131072]{0}', space=vmem, size = 0x20000, scoped, tag = 'input window, operand 1, single buffered']
    #allocation6 [shape = 's32[1]{0}', space=sflag, size = 0x4, scoped, tag = 'scoped memory for tpu_custom_call.1']
    #allocation7 [shape = 'u8[32768]{0}', space=vmem, size = 0x8000, scoped, tag = 'output window, operand 0']
    %8 = vsyncpa [#allocation3], 0
    %s9 = scalar_lea.sflag [#allocation3], 1
    %10 = vsyncpa %s9, 0
    %11 = vsyncpa [#allocation6], 0
    %12 = vsyncpa [#allocation4], 0
    %s13 = scalar_lea.sflag [#allocation4], 1
    %14 = vsyncpa %s13, 0
    loop: start=0, step=1, limit=4
    $region2: #{tpu_custom_call.1} parent=1 // loop_pre_header
      _
    $region3: #{tpu_custom_call.1} parent=1 // loop_header
      %s16 = sphi 0, %s20
      %p17 = scmp.ge.s32.totalorder %s16, 4
      %s26 = sphi 0, %s28
      %s29 = sphi 0, %s26
      %s30 = sphi 0, %s29
      %s46 = sphi 0, %s30
      %s50 = sphi 0, %s50
      %s52 = sphi 0, %s50
      %s53 = sphi 0, %s52
      %s67 = sphi 0, %s53
      %s71 = sphi 0, %s71
      %s73 = sphi 0, %s71
      %s74 = sphi 0, %s73
      %s88 = sphi 0, %s74
      %s94 = sphi 0, %s96
      %s97 = sphi 0, %s94
      %s98 = sphi 0, %s97
      %s114 = sphi 0, %s98
    $region4: #{tpu_custom_call.1} parent=1 // loop_header_branch
      %19 = sbr.rel (%p17) target = $region8
    $region5: #{tpu_custom_call.1} parent=1 // loop_body
      %s21 = ssub.s32 %s16, 1
      %s22 = ssub.s32 %s16, 2
      %s23 = sadd.s32 %s16, 1
      %s24 = ssub.s32 %s16, %s23
      %p25 = scmp.eq.s32.totalorder %s24, 0
      %s27 = sadd.s32 %s26, 1
      %s28 = scalar_select %p25, %s26, %s27
      %p31 = pneg %p25
      %p32 = scmp.eq.s32.totalorder %s16, 1
      %p33 = por %p31, %p32
      %p34 = scmp.ne.s32.totalorder %s26, %s29
      %p35 = scmp.eq.s32.totalorder %s16, 0
      %p36 = por %p34, %p35
      %p37 = scmp.ne.s32.totalorder %s26, %s29
      %p38 = scmp.eq.s32.totalorder %s21, 1
      %p39 = por %p37, %p38
      %p40 = scmp.ne.s32.totalorder %s29, %s30
      %p41 = scmp.eq.s32.totalorder %s21, 0
      %p42 = por %p40, %p41
      %p43 = scmp.ne.s32.totalorder %s29, %s30
      %p44 = scmp.eq.s32.totalorder %s22, 1
      %p45 = por %p43, %p44
      %p47 = scmp.ne.s32.totalorder %s30, %s46
      %p48 = scmp.eq.s32.totalorder %s22, 0
      %p49 = por %p47, %p48
      %s51 = sadd.s32 %s50, 1
      %p54 = scmp.eq.s32.totalorder %s16, 1
      %p55 = scmp.ne.s32.totalorder %s50, %s52
      %p56 = scmp.eq.s32.totalorder %s16, 0
      %p57 = por %p55, %p56
      %p58 = scmp.ne.s32.totalorder %s50, %s52
      %p59 = scmp.eq.s32.totalorder %s21, 1
      %p60 = por %p58, %p59
      %p61 = scmp.ne.s32.totalorder %s52, %s53
      %p62 = scmp.eq.s32.totalorder %s21, 0
      %p63 = por %p61, %p62
      %p64 = scmp.ne.s32.totalorder %s52, %s53
      %p65 = scmp.eq.s32.totalorder %s22, 1
      %p66 = por %p64, %p65
      %p68 = scmp.ne.s32.totalorder %s53, %s67
      %p69 = scmp.eq.s32.totalorder %s22, 0
      %p70 = por %p68, %p69
      %s72 = sadd.s32 %s71, 1
      %p75 = scmp.eq.s32.totalorder %s16, 1
      %p76 = scmp.ne.s32.totalorder %s71, %s73
      %p77 = scmp.eq.s32.totalorder %s16, 0
      %p78 = por %p76, %p77
      %p79 = scmp.ne.s32.totalorder %s71, %s73
      %p80 = scmp.eq.s32.totalorder %s21, 1
      %p81 = por %p79, %p80
      %p82 = scmp.ne.s32.totalorder %s73, %s74
      %p83 = scmp.eq.s32.totalorder %s21, 0
      %p84 = por %p82, %p83
      %p85 = scmp.ne.s32.totalorder %s73, %s74
      %p86 = scmp.eq.s32.totalorder %s22, 1
      %p87 = por %p85, %p86
      %p89 = scmp.ne.s32.totalorder %s74, %s88
      %p90 = scmp.eq.s32.totalorder %s22, 0
      %p91 = por %p89, %p90
      %s92 = ssub.s32 %s16, %s23
      %p93 = scmp.eq.s32.totalorder %s92, 0
      %s95 = sadd.s32 %s94, 1
      %s96 = scalar_select %p93, %s94, %s95
      %p99 = pneg %p93
      %p100 = scmp.eq.s32.totalorder %s16, 1
      %p101 = por %p99, %p100
      %p102 = scmp.ne.s32.totalorder %s94, %s97
      %p103 = scmp.eq.s32.totalorder %s16, 0
      %p104 = por %p102, %p103
      %p105 = scmp.ne.s32.totalorder %s94, %s97
      %p106 = scmp.eq.s32.totalorder %s21, 1
      %p107 = por %p105, %p106
      %p108 = scmp.ne.s32.totalorder %s97, %s98
      %p109 = scmp.eq.s32.totalorder %s21, 0
      %p110 = por %p108, %p109
      %p111 = scmp.ne.s32.totalorder %s97, %s98
      %p112 = scmp.eq.s32.totalorder %s22, 1
      %p113 = por %p111, %p112
      %p115 = scmp.ne.s32.totalorder %s98, %s114
      %p116 = scmp.eq.s32.totalorder %s22, 0
      %p117 = por %p115, %p116
      %p118 = scmp.le.s32.totalorder 1, %s16
      %p119 = scmp.lt.s32.totalorder %s16, 3
      %p120 = pnand %p118, %p119
      %p121 = pneg %p120
      // Predicated region
      $region9: #{tpu_custom_call.1} parent=5 // pred_check
        _
      $region10: #{tpu_custom_call.1} parent=5 // pred_check_branch
        %123 = sbr.rel (%p120) target = $region12
      $region11: #{tpu_custom_call.1} parent=5 // pred_region
        %s124 = ssub.s32 %s16, 1
        // Predicated region
        $region13: #{tpu_custom_call.1} parent=11 // pred_check
          %p125 = pneg %p63
        $region14: #{tpu_custom_call.1} parent=11 // pred_check_branch
          %127 = sbr.rel (%p125) target = $region16
        $region15: #{tpu_custom_call.1} parent=11 // pred_region
          %s129 = ssub.s32 4096, 4096
          %130 = vsyncadd [#allocation6], %s129
          %s131 = sshll.u32 [#allocation5], 4
          %s132 = int_to_ptr.vmem [resolvable:$true] %s131
          %137 = dma.hbm_to_vmem [thread:$0]  %s1, 4096, %s132, [#allocation6], 128, 128, 8
        $region16: #{tpu_custom_call.1} parent=11 // pred_fallthru
          _
        // Predicated region
        $region17: #{tpu_custom_call.1} parent=11 // pred_check
          %p138 = pneg %p84
        $region18: #{tpu_custom_call.1} parent=11 // pred_check_branch
          %140 = sbr.rel (%p138) target = $region20
        $region19: #{tpu_custom_call.1} parent=11 // pred_region
          _
        $region20: #{tpu_custom_call.1} parent=11 // pred_fallthru
          _
      $region12: #{tpu_custom_call.1} parent=5 // pred_fallthru
        _
      %p141 = scmp.lt.s32.totalorder %s16, 2
      // Predicated region
      $region21: #{tpu_custom_call.1} parent=5 // pred_check
        %p142 = pneg %p141
      $region22: #{tpu_custom_call.1} parent=5 // pred_check_branch
        %144 = sbr.rel (%p142) target = $region24
      $region23: #{tpu_custom_call.1} parent=5 // pred_region
        // Predicated region
        $region25: #{tpu_custom_call.1} parent=23 // pred_check
          %p145 = pneg %p36
        $region26: #{tpu_custom_call.1} parent=23 // pred_check_branch
          %147 = sbr.rel (%p145) target = $region28
        $region27: #{tpu_custom_call.1} parent=23 // pred_region
          %s148 = sand.u32 %s26, 1
          %s149 = scalar_lea.sflag [#allocation3], %s148
          %s150 = sand.u32 %s26, 1
          %s151 = smul.addr %s150, 64
          %s152 = scalar_lea.vmem [#allocation2], %s151
          %s153 = smul.u32 4, %s16
          %s155 = ssub.s32 1024, 1024
          %156 = vsyncadd %s149, %s155
          %s157 = smul.addr %s153, 2
          %s158 = smul.addr %s157, 128
          %s159 = scalar_lea.hbm %s0, %s158
          %s160 = sshll.u32 %s152, 4
          %s161 = int_to_ptr.vmem [resolvable:$true] %s160
          %166 = dma.hbm_to_vmem [thread:$0]  %s159, 1024, %s161, %s149, 256, 256, 16
        $region28: #{tpu_custom_call.1} parent=23 // pred_fallthru
          _
      $region24: #{tpu_custom_call.1} parent=5 // pred_fallthru
        _
      %p167 = scmp.le.s32.totalorder 1, %s16
      %p168 = scmp.lt.s32.totalorder %s16, 3
      %p169 = pnand %p167, %p168
      %p170 = pneg %p169
      // Predicated region
      $region29: #{tpu_custom_call.1} parent=5 // pred_check
        _
      $region30: #{tpu_custom_call.1} parent=5 // pred_check_branch
        %172 = sbr.rel (%p169) target = $region32
      $region31: #{tpu_custom_call.1} parent=5 // pred_region
        %s173 = ssub.s32 %s16, 1
        %s174 = sand.u32 %s29, 1
        %s175 = scalar_lea.sflag [#allocation3], %s174
        %s176 = sand.u32 %s29, 1
        %s177 = smul.addr %s176, 64
        %s178 = scalar_lea.vmem [#allocation2], %s177
        // Predicated region
        $region33: #{tpu_custom_call.1} parent=31 // pred_check
          %p179 = pneg %p42
        $region34: #{tpu_custom_call.1} parent=31 // pred_check_branch
          %181 = sbr.rel (%p179) target = $region36
        $region35: #{tpu_custom_call.1} parent=31 // pred_region
          %182 = dma.done %s175, 1024
        $region36: #{tpu_custom_call.1} parent=31 // pred_fallthru
          _
        // Predicated region
        $region37: #{tpu_custom_call.1} parent=31 // pred_check
          %p183 = pneg %p63
        $region38: #{tpu_custom_call.1} parent=31 // pred_check_branch
          %185 = sbr.rel (%p183) target = $region40
        $region39: #{tpu_custom_call.1} parent=31 // pred_region
          %186 = dma.done [#allocation6], 4096
        $region40: #{tpu_custom_call.1} parent=31 // pred_fallthru
          _
        %s187 = sand.u32 %s29, 1
        %s188 = scalar_lea.sflag [#allocation3], %s187
        %s189 = sand.u32 %s29, 1
        %s190 = smul.addr %s189, 64
        %s191 = scalar_lea.vmem [#allocation2], %s190
        %p192 = pneg %p42
        %p193 = pneg %p39
        %p194 = pneg %p63
        %p195 = pneg %p60
        %p196 = pneg %p84
        %p197 = pneg %p81
        %p198 = pneg %p110
        %p199 = pneg %p107
        %s200 = sand.u32 %s97, 1
        %s201 = scalar_lea.sflag [#allocation4], %s200
        %s202 = sand.u32 %s97, 1
        %s203 = smul.addr %s202, 32
        %s204 = scalar_lea.vmem [#allocation7], %s203
        %s205 = smul.u32 4, %s21
        %s206 = smul.u32 4, %s21
        %v207 = vld [vmem:[%s178] sm:$0xff]
        %v208 = vld [vmem:[%s178 + $0x8] sm:$0xff]
        %v209 = vld [vmem:[%s178 + $0x10] sm:$0xff]
        %v210 = vld [vmem:[%s178 + $0x18] sm:$0xff]
        %v211 = vld [vmem:[%s178 + $0x20] sm:$0xff]
        %v212 = vld [vmem:[%s178 + $0x28] sm:$0xff]
        %v213 = vld [vmem:[%s178 + $0x30] sm:$0xff]
        %v214 = vld [vmem:[%s178 + $0x38] sm:$0xff]
        %v215 = vld [vmem:[#allocation5] sm:$0xff]
        %v216 = vld [vmem:[#allocation5 + $0x8] sm:$0xff]
        %v217 = vld [vmem:[#allocation5 + $0x10] sm:$0xff]
        %v218 = vld [vmem:[#allocation5 + $0x18] sm:$0xff]
        %v219 = vld [vmem:[#allocation5 + $0x20] sm:$0xff]
        %v220 = vld [vmem:[#allocation5 + $0x28] sm:$0xff]
        %v221 = vld [vmem:[#allocation5 + $0x30] sm:$0xff]
        %v222 = vld [vmem:[#allocation5 + $0x38] sm:$0xff]
        %v223 = vld [vmem:[#allocation5 + $0x40] sm:$0xff]
        %v224 = vld [vmem:[#allocation5 + $0x48] sm:$0xff]
        %v225 = vld [vmem:[#allocation5 + $0x50] sm:$0xff]
        %v226 = vld [vmem:[#allocation5 + $0x58] sm:$0xff]
        %v227 = vld [vmem:[#allocation5 + $0x60] sm:$0xff]
        %v228 = vld [vmem:[#allocation5 + $0x68] sm:$0xff]
        %v229 = vld [vmem:[#allocation5 + $0x70] sm:$0xff]
        %v230 = vld [vmem:[#allocation5 + $0x78] sm:$0xff]
        %v231 = vld [vmem:[#allocation5 + $0x80] sm:$0xff]
        %v232 = vld [vmem:[#allocation5 + $0x88] sm:$0xff]
        %v233 = vld [vmem:[#allocation5 + $0x90] sm:$0xff]
        %v234 = vld [vmem:[#allocation5 + $0x98] sm:$0xff]
        %v235 = vld [vmem:[#allocation5 + $0xa0] sm:$0xff]
        %v236 = vld [vmem:[#allocation5 + $0xa8] sm:$0xff]
        %v237 = vld [vmem:[#allocation5 + $0xb0] sm:$0xff]
        %v238 = vld [vmem:[#allocation5 + $0xb8] sm:$0xff]
        %v239 = vld [vmem:[#allocation5 + $0xc0] sm:$0xff]
        %v240 = vld [vmem:[#allocation5 + $0xc8] sm:$0xff]
        %v241 = vld [vmem:[#allocation5 + $0xd0] sm:$0xff]
        %v242 = vld [vmem:[#allocation5 + $0xd8] sm:$0xff]
        %v243 = vld [vmem:[#allocation5 + $0xe0] sm:$0xff]
        %v244 = vld [vmem:[#allocation5 + $0xe8] sm:$0xff]
        %v245 = vld [vmem:[#allocation5 + $0xf0] sm:$0xff]
        %v246 = vld [vmem:[#allocation5 + $0xf8] sm:$0xff]
        %v247 = vld [vmem:[%s2] sm:$0x1]
        %v249 = vlaneseq
        %v250 = vshrl.u32 %v249, 7
        %v251 = vsub.s32 0, %v250
        %v252 = vrot.slane %v247, %v251
        %254 = vmatprep.subr.mxu0 0.0
        %v255 = vand.u32 %v215, 4294901760
        %256 = vmatpush1.msra.mxu0 %v255
        %257 = vmatprep.subr.mxu0 0.0
        %v258 = vand.u32 %v216, 4294901760
        %259 = vmatpush1.msra.mxu0 %v258
        %260 = vmatprep.subr.mxu0 0.0
        %v261 = vand.u32 %v217, 4294901760
        %262 = vmatpush1.msra.mxu0 %v261
        %263 = vmatprep.subr.mxu0 0.0
        %v264 = vand.u32 %v218, 4294901760
        %265 = vmatpush1.msra.mxu0 %v264
        %266 = vmatprep.subr.mxu0 0.0
        %v267 = vand.u32 %v219, 4294901760
        %268 = vmatpush1.msra.mxu0 %v267
        %269 = vmatprep.subr.mxu0 0.0
        %v270 = vand.u32 %v220, 4294901760
        %271 = vmatpush1.msra.mxu0 %v270
        %272 = vmatprep.subr.mxu0 0.0
        %v273 = vand.u32 %v221, 4294901760
        %274 = vmatpush1.msra.mxu0 %v273
        %275 = vmatprep.subr.mxu0 0.0
        %v276 = vand.u32 %v222, 4294901760
        %277 = vmatpush1.msra.mxu0 %v276
        %278 = vmatprep.subr.mxu0 0.0
        %v279 = vand.u32 %v223, 4294901760
        %280 = vmatpush1.msra.mxu0 %v279
        %281 = vmatprep.subr.mxu0 0.0
        %v282 = vand.u32 %v224, 4294901760
        %283 = vmatpush1.msra.mxu0 %v282
        %284 = vmatprep.subr.mxu0 0.0
        %v285 = vand.u32 %v225, 4294901760
        %286 = vmatpush1.msra.mxu0 %v285
        %287 = vmatprep.subr.mxu0 0.0
        %v288 = vand.u32 %v226, 4294901760
        %289 = vmatpush1.msra.mxu0 %v288
        %290 = vmatprep.subr.mxu0 0.0
        %v291 = vand.u32 %v227, 4294901760
        %292 = vmatpush1.msra.mxu0 %v291
        %293 = vmatprep.subr.mxu0 0.0
        %v294 = vand.u32 %v228, 4294901760
        %295 = vmatpush1.msra.mxu0 %v294
        %296 = vmatprep.subr.mxu0 0.0
        %v297 = vand.u32 %v229, 4294901760
        %298 = vmatpush1.msra.mxu0 %v297
        %299 = vmatprep.subr.mxu0 0.0
        %v300 = vand.u32 %v230, 4294901760
        %301 = vmatpush1.msra.mxu0 %v300
        %302 = vmatprep.subr.mxu0 0.0
        %v303 = vand.u32 %v231, 4294901760
        %304 = vmatpush1.msra.mxu0 %v303
        %305 = vmatprep.subr.mxu0 0.0
        %v306 = vand.u32 %v232, 4294901760
        %307 = vmatpush1.msra.mxu0 %v306
        %308 = vmatprep.subr.mxu0 0.0
        %v309 = vand.u32 %v233, 4294901760
        %310 = vmatpush1.msra.mxu0 %v309
        %311 = vmatprep.subr.mxu0 0.0
        %v312 = vand.u32 %v234, 4294901760
        %313 = vmatpush1.msra.mxu0 %v312
        %314 = vmatprep.subr.mxu0 0.0
        %v315 = vand.u32 %v235, 4294901760
        %316 = vmatpush1.msra.mxu0 %v315
        %317 = vmatprep.subr.mxu0 0.0
        %v318 = vand.u32 %v236, 4294901760
        %319 = vmatpush1.msra.mxu0 %v318
        %320 = vmatprep.subr.mxu0 0.0
        %v321 = vand.u32 %v237, 4294901760
        %322 = vmatpush1.msra.mxu0 %v321
        %323 = vmatprep.subr.mxu0 0.0
        %v324 = vand.u32 %v238, 4294901760
        %325 = vmatpush1.msra.mxu0 %v324
        %326 = vmatprep.subr.mxu0 0.0
        %v327 = vand.u32 %v239, 4294901760
        %328 = vmatpush1.msra.mxu0 %v327
        %329 = vmatprep.subr.mxu0 0.0
        %v330 = vand.u32 %v240, 4294901760
        %331 = vmatpush1.msra.mxu0 %v330
        %332 = vmatprep.subr.mxu0 0.0
        %v333 = vand.u32 %v241, 4294901760
        %334 = vmatpush1.msra.mxu0 %v333
        %335 = vmatprep.subr.mxu0 0.0
        %v336 = vand.u32 %v242, 4294901760
        %337 = vmatpush1.msra.mxu0 %v336
        %338 = vmatprep.subr.mxu0 0.0
        %v339 = vand.u32 %v243, 4294901760
        %340 = vmatpush1.msra.mxu0 %v339
        %341 = vmatprep.subr.mxu0 0.0
        %v342 = vand.u32 %v244, 4294901760
        %343 = vmatpush1.msra.mxu0 %v342
        %344 = vmatprep.subr.mxu0 0.0
        %v345 = vand.u32 %v245, 4294901760
        %346 = vmatpush1.msra.mxu0 %v345
        %347 = vmatprep.subr.mxu0 0.0
        %v348 = vand.u32 %v246, 4294901760
        %349 = vmatpush1.msra.mxu0 %v348
        %v350 = vand.u32 %v208, 4294901760
        %v351 = vsub.f32 %v208, %v350
        %v352 = vand.u32 %v351, 4294901760
        %v353 = vsub.f32 %v351, %v352
        %v354 = vand.u32 %v353, 4294901760
        %355 = vmatprep.mubr.f32.mxu0 %v354
        %v356 = vand.u32 %v207, 4294901760
        %v357 = vsub.f32 %v207, %v356
        %v358 = vand.u32 %v357, 4294901760
        %v359 = vsub.f32 %v357, %v358
        %v360 = vand.u32 %v359, 4294901760
        %361 = vmatmul.mubr.f32.gmra.mrb[0].mxu0 %v360
        %v362 = vpop.f32.mrb[0].mxu0
        %v363 = vadd.f32 %v252, %v362
        %v364 = vpop.f32.mrb[0].mxu0
        %v365 = vand.u32 %v210, 4294901760
        %v366 = vsub.f32 %v210, %v365
        %v367 = vand.u32 %v366, 4294901760
        %v368 = vsub.f32 %v366, %v367
        %v369 = vand.u32 %v368, 4294901760
        %370 = vmatprep.mubr.f32.mxu0 %v369
        %v371 = vand.u32 %v209, 4294901760
        %v372 = vsub.f32 %v209, %v371
        %v373 = vand.u32 %v372, 4294901760
        %v374 = vsub.f32 %v372, %v373
        %v375 = vand.u32 %v374, 4294901760
        %376 = vmatmul.mubr.f32.gmra.mrb[0].mxu0 %v375
        %v377 = vpop.f32.mrb[0].mxu0
        %v378 = vadd.f32 %v252, %v377
        %v379 = vpop.f32.mrb[0].mxu0
        %v380 = vand.u32 %v212, 4294901760
        %v381 = vsub.f32 %v212, %v380
        %v382 = vand.u32 %v381, 4294901760
        %v383 = vsub.f32 %v381, %v382
        %v384 = vand.u32 %v383, 4294901760
        %385 = vmatprep.mubr.f32.mxu0 %v384
        %v386 = vand.u32 %v211, 4294901760
        %v387 = vsub.f32 %v211, %v386
        %v388 = vand.u32 %v387, 4294901760
        %v389 = vsub.f32 %v387, %v388
        %v390 = vand.u32 %v389, 4294901760
        %391 = vmatmul.mubr.f32.gmra.mrb[0].mxu0 %v390
        %v392 = vpop.f32.mrb[0].mxu0
        %v393 = vadd.f32 %v252, %v392
        %v394 = vpop.f32.mrb[0].mxu0
        %v395 = vand.u32 %v214, 4294901760
        %v396 = vsub.f32 %v214, %v395
        %v397 = vand.u32 %v396, 4294901760
        %v398 = vsub.f32 %v396, %v397
        %v399 = vand.u32 %v398, 4294901760
        %400 = vmatprep.mubr.f32.mxu0 %v399
        %v401 = vand.u32 %v213, 4294901760
        %v402 = vsub.f32 %v213, %v401
        %v403 = vand.u32 %v402, 4294901760
        %v404 = vsub.f32 %v402, %v403
        %v405 = vand.u32 %v404, 4294901760
        %406 = vmatmul.mubr.f32.gmra.mrb[0].mxu0 %v405
        %v407 = vpop.f32.mrb[0].mxu0
        %v408 = vadd.f32 %v252, %v407
        %v409 = vpop.f32.mrb[0].mxu0
        %410 = vdwg.mxu0
        %411 = vmatprep.subr.mxu0 0.0
        %v412 = vand.u32 %v215, 4294901760
        %v413 = vsub.f32 %v215, %v412
        %v414 = vand.u32 %v413, 4294901760
        %v415 = vsub.f32 %v413, %v414
        %v416 = vand.u32 %v415, 4294901760
        %417 = vmatpush1.msra.mxu0 %v416
        %418 = vmatprep.subr.mxu0 0.0
        %v419 = vand.u32 %v216, 4294901760
        %v420 = vsub.f32 %v216, %v419
        %v421 = vand.u32 %v420, 4294901760
        %v422 = vsub.f32 %v420, %v421
        %v423 = vand.u32 %v422, 4294901760
        %424 = vmatpush1.msra.mxu0 %v423
        %425 = vmatprep.subr.mxu0 0.0
        %v426 = vand.u32 %v217, 4294901760
        %v427 = vsub.f32 %v217, %v426
        %v428 = vand.u32 %v427, 4294901760
        %v429 = vsub.f32 %v427, %v428
        %v430 = vand.u32 %v429, 4294901760
        %431 = vmatpush1.msra.mxu0 %v430
        %432 = vmatprep.subr.mxu0 0.0
        %v433 = vand.u32 %v218, 4294901760
        %v434 = vsub.f32 %v218, %v433
        %v435 = vand.u32 %v434, 4294901760
        %v436 = vsub.f32 %v434, %v435
        %v437 = vand.u32 %v436, 4294901760
        %438 = vmatpush1.msra.mxu0 %v437
        %439 = vmatprep.subr.mxu0 0.0
        %v440 = vand.u32 %v219, 4294901760
        %v441 = vsub.f32 %v219, %v440
        %v442 = vand.u32 %v441, 4294901760
        %v443 = vsub.f32 %v441, %v442
        %v444 = vand.u32 %v443, 4294901760
        %445 = vmatpush1.msra.mxu0 %v444
        %446 = vmatprep.subr.mxu0 0.0
        %v447 = vand.u32 %v220, 4294901760
        %v448 = vsub.f32 %v220, %v447
        %v449 = vand.u32 %v448, 4294901760
        %v450 = vsub.f32 %v448, %v449
        %v451 = vand.u32 %v450, 4294901760
        %452 = vmatpush1.msra.mxu0 %v451
        %453 = vmatprep.subr.mxu0 0.0
        %v454 = vand.u32 %v221, 4294901760
        %v455 = vsub.f32 %v221, %v454
        %v456 = vand.u32 %v455, 4294901760
        %v457 = vsub.f32 %v455, %v456
        %v458 = vand.u32 %v457, 4294901760
        %459 = vmatpush1.msra.mxu0 %v458
        %460 = vmatprep.subr.mxu0 0.0
        %v461 = vand.u32 %v222, 4294901760
        %v462 = vsub.f32 %v222, %v461
        %v463 = vand.u32 %v462, 4294901760
        %v464 = vsub.f32 %v462, %v463
        %v465 = vand.u32 %v464, 4294901760
        %466 = vmatpush1.msra.mxu0 %v465
        %467 = vmatprep.subr.mxu0 0.0
        %v468 = vand.u32 %v223, 4294901760
        %v469 = vsub.f32 %v223, %v468
        %v470 = vand.u32 %v469, 4294901760
        %v471 = vsub.f32 %v469, %v470
        %v472 = vand.u32 %v471, 4294901760
        %473 = vmatpush1.msra.mxu0 %v472
        %474 = vmatprep.subr.mxu0 0.0
        %v475 = vand.u32 %v224, 4294901760
        %v476 = vsub.f32 %v224, %v475
        %v477 = vand.u32 %v476, 4294901760
        %v478 = vsub.f32 %v476, %v477
        %v479 = vand.u32 %v478, 4294901760
        %480 = vmatpush1.msra.mxu0 %v479
        %481 = vmatprep.subr.mxu0 0.0
        %v482 = vand.u32 %v225, 4294901760
        %v483 = vsub.f32 %v225, %v482
        %v484 = vand.u32 %v483, 4294901760
        %v485 = vsub.f32 %v483, %v484
        %v486 = vand.u32 %v485, 4294901760
        %487 = vmatpush1.msra.mxu0 %v486
        %488 = vmatprep.subr.mxu0 0.0
        %v489 = vand.u32 %v226, 4294901760
        %v490 = vsub.f32 %v226, %v489
        %v491 = vand.u32 %v490, 4294901760
        %v492 = vsub.f32 %v490, %v491
        %v493 = vand.u32 %v492, 4294901760
        %494 = vmatpush1.msra.mxu0 %v493
        %495 = vmatprep.subr.mxu0 0.0
        %v496 = vand.u32 %v227, 4294901760
        %v497 = vsub.f32 %v227, %v496
        %v498 = vand.u32 %v497, 4294901760
        %v499 = vsub.f32 %v497, %v498
        %v500 = vand.u32 %v499, 4294901760
        %501 = vmatpush1.msra.mxu0 %v500
        %502 = vmatprep.subr.mxu0 0.0
        %v503 = vand.u32 %v228, 4294901760
        %v504 = vsub.f32 %v228, %v503
        %v505 = vand.u32 %v504, 4294901760
        %v506 = vsub.f32 %v504, %v505
        %v507 = vand.u32 %v506, 4294901760
        %508 = vmatpush1.msra.mxu0 %v507
        %509 = vmatprep.subr.mxu0 0.0
        %v510 = vand.u32 %v229, 4294901760
        %v511 = vsub.f32 %v229, %v510
        %v512 = vand.u32 %v511, 4294901760
        %v513 = vsub.f32 %v511, %v512
        %v514 = vand.u32 %v513, 4294901760
        %515 = vmatpush1.msra.mxu0 %v514
        %516 = vmatprep.subr.mxu0 0.0
        %v517 = vand.u32 %v230, 4294901760
        %v518 = vsub.f32 %v230, %v517
        %v519 = vand.u32 %v518, 4294901760
        %v520 = vsub.f32 %v518, %v519
        %v521 = vand.u32 %v520, 4294901760
        %522 = vmatpush1.msra.mxu0 %v521
        %523 = vmatprep.subr.mxu0 0.0
        %v524 = vand.u32 %v231, 4294901760
        %v525 = vsub.f32 %v231, %v524
        %v526 = vand.u32 %v525, 4294901760
        %v527 = vsub.f32 %v525, %v526
        %v528 = vand.u32 %v527, 4294901760
        %529 = vmatpush1.msra.mxu0 %v528
        %530 = vmatprep.subr.mxu0 0.0
        %v531 = vand.u32 %v232, 4294901760
        %v532 = vsub.f32 %v232, %v531
        %v533 = vand.u32 %v532, 4294901760
        %v534 = vsub.f32 %v532, %v533
        %v535 = vand.u32 %v534, 4294901760
        %536 = vmatpush1.msra.mxu0 %v535
        %537 = vmatprep.subr.mxu0 0.0
        %v538 = vand.u32 %v233, 4294901760
        %v539 = vsub.f32 %v233, %v538
        %v540 = vand.u32 %v539, 4294901760
        %v541 = vsub.f32 %v539, %v540
        %v542 = vand.u32 %v541, 4294901760
        %543 = vmatpush1.msra.mxu0 %v542
        %544 = vmatprep.subr.mxu0 0.0
        %v545 = vand.u32 %v234, 4294901760
        %v546 = vsub.f32 %v234, %v545
        %v547 = vand.u32 %v546, 4294901760
        %v548 = vsub.f32 %v546, %v547
        %v549 = vand.u32 %v548, 4294901760
        %550 = vmatpush1.msra.mxu0 %v549
        %551 = vmatprep.subr.mxu0 0.0
        %v552 = vand.u32 %v235, 4294901760
        %v553 = vsub.f32 %v235, %v552
        %v554 = vand.u32 %v553, 4294901760
        %v555 = vsub.f32 %v553, %v554
        %v556 = vand.u32 %v555, 4294901760
        %557 = vmatpush1.msra.mxu0 %v556
        %558 = vmatprep.subr.mxu0 0.0
        %v559 = vand.u32 %v236, 4294901760
        %v560 = vsub.f32 %v236, %v559
        %v561 = vand.u32 %v560, 4294901760
        %v562 = vsub.f32 %v560, %v561
        %v563 = vand.u32 %v562, 4294901760
        %564 = vmatpush1.msra.mxu0 %v563
        %565 = vmatprep.subr.mxu0 0.0
        %v566 = vand.u32 %v237, 4294901760
        %v567 = vsub.f32 %v237, %v566
        %v568 = vand.u32 %v567, 4294901760
        %v569 = vsub.f32 %v567, %v568
        %v570 = vand.u32 %v569, 4294901760
        %571 = vmatpush1.msra.mxu0 %v570
        %572 = vmatprep.subr.mxu0 0.0
        %v573 = vand.u32 %v238, 4294901760
        %v574 = vsub.f32 %v238, %v573
        %v575 = vand.u32 %v574, 4294901760
        %v576 = vsub.f32 %v574, %v575
        %v577 = vand.u32 %v576, 4294901760
        %578 = vmatpush1.msra.mxu0 %v577
        %579 = vmatprep.subr.mxu0 0.0
        %v580 = vand.u32 %v239, 4294901760
        %v581 = vsub.f32 %v239, %v580
        %v582 = vand.u32 %v581, 4294901760
        %v583 = vsub.f32 %v581, %v582
        %v584 = vand.u32 %v583, 4294901760
        %585 = vmatpush1.msra.mxu0 %v584
        %586 = vmatprep.subr.mxu0 0.0
        %v587 = vand.u32 %v240, 4294901760
        %v588 = vsub.f32 %v240, %v587
        %v589 = vand.u32 %v588, 4294901760
        %v590 = vsub.f32 %v588, %v589
        %v591 = vand.u32 %v590, 4294901760
        %592 = vmatpush1.msra.mxu0 %v591
        %593 = vmatprep.subr.mxu0 0.0
        %v594 = vand.u32 %v241, 4294901760
        %v595 = vsub.f32 %v241, %v594
        %v596 = vand.u32 %v595, 4294901760
        %v597 = vsub.f32 %v595, %v596
        %v598 = vand.u32 %v597, 4294901760
        %599 = vmatpush1.msra.mxu0 %v598
        %600 = vmatprep.subr.mxu0 0.0
        %v601 = vand.u32 %v242, 4294901760
        %v602 = vsub.f32 %v242, %v601
        %v603 = vand.u32 %v602, 4294901760
        %v604 = vsub.f32 %v602, %v603
        %v605 = vand.u32 %v604, 4294901760
        %606 = vmatpush1.msra.mxu0 %v605
        %607 = vmatprep.subr.mxu0 0.0
        %v608 = vand.u32 %v243, 4294901760
        %v609 = vsub.f32 %v243, %v608
        %v610 = vand.u32 %v609, 4294901760
        %v611 = vsub.f32 %v609, %v610
        %v612 = vand.u32 %v611, 4294901760
        %613 = vmatpush1.msra.mxu0 %v612
        %614 = vmatprep.subr.mxu0 0.0
        %v615 = vand.u32 %v244, 4294901760
        %v616 = vsub.f32 %v244, %v615
        %v617 = vand.u32 %v616, 4294901760
        %v618 = vsub.f32 %v616, %v617
        %v619 = vand.u32 %v618, 4294901760
        %620 = vmatpush1.msra.mxu0 %v619
        %621 = vmatprep.subr.mxu0 0.0
        %v622 = vand.u32 %v245, 4294901760
        %v623 = vsub.f32 %v245, %v622
        %v624 = vand.u32 %v623, 4294901760
        %v625 = vsub.f32 %v623, %v624
        %v626 = vand.u32 %v625, 4294901760
        %627 = vmatpush1.msra.mxu0 %v626
        %628 = vmatprep.subr.mxu0 0.0
        %v629 = vand.u32 %v246, 4294901760
        %v630 = vsub.f32 %v246, %v629
        %v631 = vand.u32 %v630, 4294901760
        %v632 = vsub.f32 %v630, %v631
        %v633 = vand.u32 %v632, 4294901760
        %634 = vmatpush1.msra.mxu0 %v633
        %v635 = vand.u32 %v208, 4294901760
        %636 = vmatprep.mubr.f32.mxu0 %v635
        %v637 = vand.u32 %v207, 4294901760
        %638 = vmatmul.mubr.f32.gmra.mrb[0].mxu0 %v637
        %v639 = vpop.f32.mrb[0].mxu0
        %v640 = vadd.f32 %v363, %v639
        %v641 = vpop.f32.mrb[0].mxu0
        %v642 = vand.u32 %v210, 4294901760
        %643 = vmatprep.mubr.f32.mxu0 %v642
        %v644 = vand.u32 %v209, 4294901760
        %645 = vmatmul.mubr.f32.gmra.mrb[0].mxu0 %v644
        %v646 = vpop.f32.mrb[0].mxu0
        %v647 = vadd.f32 %v378, %v646
        %v648 = vpop.f32.mrb[0].mxu0
        %v649 = vand.u32 %v212, 4294901760
        %650 = vmatprep.mubr.f32.mxu0 %v649
        %v651 = vand.u32 %v211, 4294901760
        %652 = vmatmul.mubr.f32.gmra.mrb[0].mxu0 %v651
        %v653 = vpop.f32.mrb[0].mxu0
        %v654 = vadd.f32 %v393, %v653
        %v655 = vpop.f32.mrb[0].mxu0
        %v656 = vand.u32 %v214, 4294901760
        %657 = vmatprep.mubr.f32.mxu0 %v656
        %v658 = vand.u32 %v213, 4294901760
        %659 = vmatmul.mubr.f32.gmra.mrb[0].mxu0 %v658
        %v660 = vpop.f32.mrb[0].mxu0
        %v661 = vadd.f32 %v408, %v660
        %v662 = vpop.f32.mrb[0].mxu0
        %663 = vdwg.mxu0
        %664 = vmatprep.subr.mxu0 0.0
        %v665 = vand.u32 %v215, 4294901760
        %v666 = vsub.f32 %v215, %v665
        %667 = vmatpush1.msra.mxu0 %v666
        %668 = vmatprep.subr.mxu0 0.0
        %v669 = vand.u32 %v216, 4294901760
        %v670 = vsub.f32 %v216, %v669
        %671 = vmatpush1.msra.mxu0 %v670
        %672 = vmatprep.subr.mxu0 0.0
        %v673 = vand.u32 %v217, 4294901760
        %v674 = vsub.f32 %v217, %v673
        %675 = vmatpush1.msra.mxu0 %v674
        %676 = vmatprep.subr.mxu0 0.0
        %v677 = vand.u32 %v218, 4294901760
        %v678 = vsub.f32 %v218, %v677
        %679 = vmatpush1.msra.mxu0 %v678
        %680 = vmatprep.subr.mxu0 0.0
        %v681 = vand.u32 %v219, 4294901760
        %v682 = vsub.f32 %v219, %v681
        %683 = vmatpush1.msra.mxu0 %v682
        %684 = vmatprep.subr.mxu0 0.0
        %v685 = vand.u32 %v220, 4294901760
        %v686 = vsub.f32 %v220, %v685
        %687 = vmatpush1.msra.mxu0 %v686
        %688 = vmatprep.subr.mxu0 0.0
        %v689 = vand.u32 %v221, 4294901760
        %v690 = vsub.f32 %v221, %v689
        %691 = vmatpush1.msra.mxu0 %v690
        %692 = vmatprep.subr.mxu0 0.0
        %v693 = vand.u32 %v222, 4294901760
        %v694 = vsub.f32 %v222, %v693
        %695 = vmatpush1.msra.mxu0 %v694
        %696 = vmatprep.subr.mxu0 0.0
        %v697 = vand.u32 %v223, 4294901760
        %v698 = vsub.f32 %v223, %v697
        %699 = vmatpush1.msra.mxu0 %v698
        %700 = vmatprep.subr.mxu0 0.0
        %v701 = vand.u32 %v224, 4294901760
        %v702 = vsub.f32 %v224, %v701
        %703 = vmatpush1.msra.mxu0 %v702
        %704 = vmatprep.subr.mxu0 0.0
        %v705 = vand.u32 %v225, 4294901760
        %v706 = vsub.f32 %v225, %v705
        %707 = vmatpush1.msra.mxu0 %v706
        %708 = vmatprep.subr.mxu0 0.0
        %v709 = vand.u32 %v226, 4294901760
        %v710 = vsub.f32 %v226, %v709
        %711 = vmatpush1.msra.mxu0 %v710
        %712 = vmatprep.subr.mxu0 0.0
        %v713 = vand.u32 %v227, 4294901760
        %v714 = vsub.f32 %v227, %v713
        %715 = vmatpush1.msra.mxu0 %v714
        %716 = vmatprep.subr.mxu0 0.0
        %v717 = vand.u32 %v228, 4294901760
        %v718 = vsub.f32 %v228, %v717
        %719 = vmatpush1.msra.mxu0 %v718
        %720 = vmatprep.subr.mxu0 0.0
        %v721 = vand.u32 %v229, 4294901760
        %v722 = vsub.f32 %v229, %v721
        %723 = vmatpush1.msra.mxu0 %v722
        %724 = vmatprep.subr.mxu0 0.0
        %v725 = vand.u32 %v230, 4294901760
        %v726 = vsub.f32 %v230, %v725
        %727 = vmatpush1.msra.mxu0 %v726
        %728 = vmatprep.subr.mxu0 0.0
        %v729 = vand.u32 %v231, 4294901760
        %v730 = vsub.f32 %v231, %v729
        %731 = vmatpush1.msra.mxu0 %v730
        %732 = vmatprep.subr.mxu0 0.0
        %v733 = vand.u32 %v232, 4294901760
        %v734 = vsub.f32 %v232, %v733
        %735 = vmatpush1.msra.mxu0 %v734
        %736 = vmatprep.subr.mxu0 0.0
        %v737 = vand.u32 %v233, 4294901760
        %v738 = vsub.f32 %v233, %v737
        %739 = vmatpush1.msra.mxu0 %v738
        %740 = vmatprep.subr.mxu0 0.0
        %v741 = vand.u32 %v234, 4294901760
        %v742 = vsub.f32 %v234, %v741
        %743 = vmatpush1.msra.mxu0 %v742
        %744 = vmatprep.subr.mxu0 0.0
        %v745 = vand.u32 %v235, 4294901760
        %v746 = vsub.f32 %v235, %v745
        %747 = vmatpush1.msra.mxu0 %v746
        %748 = vmatprep.subr.mxu0 0.0
        %v749 = vand.u32 %v236, 4294901760
        %v750 = vsub.f32 %v236, %v749
        %751 = vmatpush1.msra.mxu0 %v750
        %752 = vmatprep.subr.mxu0 0.0
        %v753 = vand.u32 %v237, 4294901760
        %v754 = vsub.f32 %v237, %v753
        %755 = vmatpush1.msra.mxu0 %v754
        %756 = vmatprep.subr.mxu0 0.0
        %v757 = vand.u32 %v238, 4294901760
        %v758 = vsub.f32 %v238, %v757
        %759 = vmatpush1.msra.mxu0 %v758
        %760 = vmatprep.subr.mxu0 0.0
        %v761 = vand.u32 %v239, 4294901760
        %v762 = vsub.f32 %v239, %v761
        %763 = vmatpush1.msra.mxu0 %v762
        %764 = vmatprep.subr.mxu0 0.0
        %v765 = vand.u32 %v240, 4294901760
        %v766 = vsub.f32 %v240, %v765
        %767 = vmatpush1.msra.mxu0 %v766
        %768 = vmatprep.subr.mxu0 0.0
        %v769 = vand.u32 %v241, 4294901760
        %v770 = vsub.f32 %v241, %v769
        %771 = vmatpush1.msra.mxu0 %v770
        %772 = vmatprep.subr.mxu0 0.0
        %v773 = vand.u32 %v242, 4294901760
        %v774 = vsub.f32 %v242, %v773
        %775 = vmatpush1.msra.mxu0 %v774
        %776 = vmatprep.subr.mxu0 0.0
        %v777 = vand.u32 %v243, 4294901760
        %v778 = vsub.f32 %v243, %v777
        %779 = vmatpush1.msra.mxu0 %v778
        %780 = vmatprep.subr.mxu0 0.0
        %v781 = vand.u32 %v244, 4294901760
        %v782 = vsub.f32 %v244, %v781
        %783 = vmatpush1.msra.mxu0 %v782
        %784 = vmatprep.subr.mxu0 0.0
        %v785 = vand.u32 %v245, 4294901760
        %v786 = vsub.f32 %v245, %v785
        %787 = vmatpush1.msra.mxu0 %v786
        %788 = vmatprep.subr.mxu0 0.0
        %v789 = vand.u32 %v246, 4294901760
        %v790 = vsub.f32 %v246, %v789
        %791 = vmatpush1.msra.mxu0 %v790
        %v792 = vand.u32 %v208, 4294901760
        %v793 = vsub.f32 %v208, %v792
        %794 = vmatprep.mubr.f32.mxu0 %v793
        %v795 = vand.u32 %v207, 4294901760
        %v796 = vsub.f32 %v207, %v795
        %797 = vmatmul.mubr.f32.gmra.mrb[0].mxu0 %v796
        %v798 = vpop.f32.mrb[0].mxu0
        %v799 = vadd.f32 %v640, %v798
        %v800 = vpop.f32.mrb[0].mxu0
        %v801 = vand.u32 %v210, 4294901760
        %v802 = vsub.f32 %v210, %v801
        %803 = vmatprep.mubr.f32.mxu0 %v802
        %v804 = vand.u32 %v209, 4294901760
        %v805 = vsub.f32 %v209, %v804
        %806 = vmatmul.mubr.f32.gmra.mrb[0].mxu0 %v805
        %v807 = vpop.f32.mrb[0].mxu0
        %v808 = vadd.f32 %v647, %v807
        %v809 = vpop.f32.mrb[0].mxu0
        %v810 = vand.u32 %v212, 4294901760
        %v811 = vsub.f32 %v212, %v810
        %812 = vmatprep.mubr.f32.mxu0 %v811
        %v813 = vand.u32 %v211, 4294901760
        %v814 = vsub.f32 %v211, %v813
        %815 = vmatmul.mubr.f32.gmra.mrb[0].mxu0 %v814
        %v816 = vpop.f32.mrb[0].mxu0
        %v817 = vadd.f32 %v654, %v816
        %v818 = vpop.f32.mrb[0].mxu0
        %v819 = vand.u32 %v214, 4294901760
        %v820 = vsub.f32 %v214, %v819
        %821 = vmatprep.mubr.f32.mxu0 %v820
        %v822 = vand.u32 %v213, 4294901760
        %v823 = vsub.f32 %v213, %v822
        %824 = vmatmul.mubr.f32.gmra.mrb[0].mxu0 %v823
        %v825 = vpop.f32.mrb[0].mxu0
        %v826 = vadd.f32 %v661, %v825
        %v827 = vpop.f32.mrb[0].mxu0
        %828 = vdwg.mxu0
        %829 = vmatprep.subr.mxu0 0.0
        %v830 = vand.u32 %v215, 4294901760
        %831 = vmatpush1.msra.mxu0 %v830
        %832 = vmatprep.subr.mxu0 0.0
        %v833 = vand.u32 %v216, 4294901760
        %834 = vmatpush1.msra.mxu0 %v833
        %835 = vmatprep.subr.mxu0 0.0
        %v836 = vand.u32 %v217, 4294901760
        %837 = vmatpush1.msra.mxu0 %v836
        %838 = vmatprep.subr.mxu0 0.0
        %v839 = vand.u32 %v218, 4294901760
        %840 = vmatpush1.msra.mxu0 %v839
        %841 = vmatprep.subr.mxu0 0.0
        %v842 = vand.u32 %v219, 4294901760
        %843 = vmatpush1.msra.mxu0 %v842
        %844 = vmatprep.subr.mxu0 0.0
        %v845 = vand.u32 %v220, 4294901760
        %846 = vmatpush1.msra.mxu0 %v845
        %847 = vmatprep.subr.mxu0 0.0
        %v848 = vand.u32 %v221, 4294901760
        %849 = vmatpush1.msra.mxu0 %v848
        %850 = vmatprep.subr.mxu0 0.0
        %v851 = vand.u32 %v222, 4294901760
        %852 = vmatpush1.msra.mxu0 %v851
        %853 = vmatprep.subr.mxu0 0.0
        %v854 = vand.u32 %v223, 4294901760
        %855 = vmatpush1.msra.mxu0 %v854
        %856 = vmatprep.subr.mxu0 0.0
        %v857 = vand.u32 %v224, 4294901760
        %858 = vmatpush1.msra.mxu0 %v857
        %859 = vmatprep.subr.mxu0 0.0
        %v860 = vand.u32 %v225, 4294901760
        %861 = vmatpush1.msra.mxu0 %v860
        %862 = vmatprep.subr.mxu0 0.0
        %v863 = vand.u32 %v226, 4294901760
        %864 = vmatpush1.msra.mxu0 %v863
        %865 = vmatprep.subr.mxu0 0.0
        %v866 = vand.u32 %v227, 4294901760
        %867 = vmatpush1.msra.mxu0 %v866
        %868 = vmatprep.subr.mxu0 0.0
        %v869 = vand.u32 %v228, 4294901760
        %870 = vmatpush1.msra.mxu0 %v869
        %871 = vmatprep.subr.mxu0 0.0
        %v872 = vand.u32 %v229, 4294901760
        %873 = vmatpush1.msra.mxu0 %v872
        %874 = vmatprep.subr.mxu0 0.0
        %v875 = vand.u32 %v230, 4294901760
        %876 = vmatpush1.msra.mxu0 %v875
        %877 = vmatprep.subr.mxu0 0.0
        %v878 = vand.u32 %v231, 4294901760
        %879 = vmatpush1.msra.mxu0 %v878
        %880 = vmatprep.subr.mxu0 0.0
        %v881 = vand.u32 %v232, 4294901760
        %882 = vmatpush1.msra.mxu0 %v881
        %883 = vmatprep.subr.mxu0 0.0
        %v884 = vand.u32 %v233, 4294901760
        %885 = vmatpush1.msra.mxu0 %v884
        %886 = vmatprep.subr.mxu0 0.0
        %v887 = vand.u32 %v234, 4294901760
        %888 = vmatpush1.msra.mxu0 %v887
        %889 = vmatprep.subr.mxu0 0.0
        %v890 = vand.u32 %v235, 4294901760
        %891 = vmatpush1.msra.mxu0 %v890
        %892 = vmatprep.subr.mxu0 0.0
        %v893 = vand.u32 %v236, 4294901760
        %894 = vmatpush1.msra.mxu0 %v893
        %895 = vmatprep.subr.mxu0 0.0
        %v896 = vand.u32 %v237, 4294901760
        %897 = vmatpush1.msra.mxu0 %v896
        %898 = vmatprep.subr.mxu0 0.0
        %v899 = vand.u32 %v238, 4294901760
        %900 = vmatpush1.msra.mxu0 %v899
        %901 = vmatprep.subr.mxu0 0.0
        %v902 = vand.u32 %v239, 4294901760
        %903 = vmatpush1.msra.mxu0 %v902
        %904 = vmatprep.subr.mxu0 0.0
        %v905 = vand.u32 %v240, 4294901760
        %906 = vmatpush1.msra.mxu0 %v905
        %907 = vmatprep.subr.mxu0 0.0
        %v908 = vand.u32 %v241, 4294901760
        %909 = vmatpush1.msra.mxu0 %v908
        %910 = vmatprep.subr.mxu0 0.0
        %v911 = vand.u32 %v242, 4294901760
        %912 = vmatpush1.msra.mxu0 %v911
        %913 = vmatprep.subr.mxu0 0.0
        %v914 = vand.u32 %v243, 4294901760
        %915 = vmatpush1.msra.mxu0 %v914
        %916 = vmatprep.subr.mxu0 0.0
        %v917 = vand.u32 %v244, 4294901760
        %918 = vmatpush1.msra.mxu0 %v917
        %919 = vmatprep.subr.mxu0 0.0
        %v920 = vand.u32 %v245, 4294901760
        %921 = vmatpush1.msra.mxu0 %v920
        %922 = vmatprep.subr.mxu0 0.0
        %v923 = vand.u32 %v246, 4294901760
        %924 = vmatpush1.msra.mxu0 %v923
        %v925 = vand.u32 %v208, 4294901760
        %v926 = vsub.f32 %v208, %v925
        %v927 = vand.u32 %v926, 4294901760
        %928 = vmatprep.mubr.f32.mxu0 %v927
        %v929 = vand.u32 %v207, 4294901760
        %v930 = vsub.f32 %v207, %v929
        %v931 = vand.u32 %v930, 4294901760
        %932 = vmatmul.mubr.f32.gmra.mrb[0].mxu0 %v931
        %v933 = vpop.f32.mrb[0].mxu0
        %v934 = vadd.f32 %v799, %v933
        %v935 = vpop.f32.mrb[0].mxu0
        %v936 = vand.u32 %v210, 4294901760
        %v937 = vsub.f32 %v210, %v936
        %v938 = vand.u32 %v937, 4294901760
        %939 = vmatprep.mubr.f32.mxu0 %v938
        %v940 = vand.u32 %v209, 4294901760
        %v941 = vsub.f32 %v209, %v940
        %v942 = vand.u32 %v941, 4294901760
        %943 = vmatmul.mubr.f32.gmra.mrb[0].mxu0 %v942
        %v944 = vpop.f32.mrb[0].mxu0
        %v945 = vadd.f32 %v808, %v944
        %v946 = vpop.f32.mrb[0].mxu0
        %v947 = vand.u32 %v212, 4294901760
        %v948 = vsub.f32 %v212, %v947
        %v949 = vand.u32 %v948, 4294901760
        %950 = vmatprep.mubr.f32.mxu0 %v949
        %v951 = vand.u32 %v211, 4294901760
        %v952 = vsub.f32 %v211, %v951
        %v953 = vand.u32 %v952, 4294901760
        %954 = vmatmul.mubr.f32.gmra.mrb[0].mxu0 %v953
        %v955 = vpop.f32.mrb[0].mxu0
        %v956 = vadd.f32 %v817, %v955
        %v957 = vpop.f32.mrb[0].mxu0
        %v958 = vand.u32 %v214, 4294901760
        %v959 = vsub.f32 %v214, %v958
        %v960 = vand.u32 %v959, 4294901760
        %961 = vmatprep.mubr.f32.mxu0 %v960
        %v962 = vand.u32 %v213, 4294901760
        %v963 = vsub.f32 %v213, %v962
        %v964 = vand.u32 %v963, 4294901760
        %965 = vmatmul.mubr.f32.gmra.mrb[0].mxu0 %v964
        %v966 = vpop.f32.mrb[0].mxu0
        %v967 = vadd.f32 %v826, %v966
        %v968 = vpop.f32.mrb[0].mxu0
        %969 = vdwg.mxu0
        %970 = vmatprep.subr.mxu0 0.0
        %v971 = vand.u32 %v215, 4294901760
        %v972 = vsub.f32 %v215, %v971
        %v973 = vand.u32 %v972, 4294901760
        %974 = vmatpush1.msra.mxu0 %v973
        %975 = vmatprep.subr.mxu0 0.0
        %v976 = vand.u32 %v216, 4294901760
        %v977 = vsub.f32 %v216, %v976
        %v978 = vand.u32 %v977, 4294901760
        %979 = vmatpush1.msra.mxu0 %v978
        %980 = vmatprep.subr.mxu0 0.0
        %v981 = vand.u32 %v217, 4294901760
        %v982 = vsub.f32 %v217, %v981
        %v983 = vand.u32 %v982, 4294901760
        %984 = vmatpush1.msra.mxu0 %v983
        %985 = vmatprep.subr.mxu0 0.0
        %v986 = vand.u32 %v218, 4294901760
        %v987 = vsub.f32 %v218, %v986
        %v988 = vand.u32 %v987, 4294901760
        %989 = vmatpush1.msra.mxu0 %v988
        %990 = vmatprep.subr.mxu0 0.0
        %v991 = vand.u32 %v219, 4294901760
        %v992 = vsub.f32 %v219, %v991
        %v993 = vand.u32 %v992, 4294901760
        %994 = vmatpush1.msra.mxu0 %v993
        %995 = vmatprep.subr.mxu0 0.0
        %v996 = vand.u32 %v220, 4294901760
        %v997 = vsub.f32 %v220, %v996
        %v998 = vand.u32 %v997, 4294901760
        %999 = vmatpush1.msra.mxu0 %v998
        %1000 = vmatprep.subr.mxu0 0.0
        %v1001 = vand.u32 %v221, 4294901760
        %v1002 = vsub.f32 %v221, %v1001
        %v1003 = vand.u32 %v1002, 4294901760
        %1004 = vmatpush1.msra.mxu0 %v1003
        %1005 = vmatprep.subr.mxu0 0.0
        %v1006 = vand.u32 %v222, 4294901760
        %v1007 = vsub.f32 %v222, %v1006
        %v1008 = vand.u32 %v1007, 4294901760
        %1009 = vmatpush1.msra.mxu0 %v1008
        %1010 = vmatprep.subr.mxu0 0.0
        %v1011 = vand.u32 %v223, 4294901760
        %v1012 = vsub.f32 %v223, %v1011
        %v1013 = vand.u32 %v1012, 4294901760
        %1014 = vmatpush1.msra.mxu0 %v1013
        %1015 = vmatprep.subr.mxu0 0.0
        %v1016 = vand.u32 %v224, 4294901760
        %v1017 = vsub.f32 %v224, %v1016
        %v1018 = vand.u32 %v1017, 4294901760
        %1019 = vmatpush1.msra.mxu0 %v1018
        %1020 = vmatprep.subr.mxu0 0.0
        %v1021 = vand.u32 %v225, 4294901760
        %v1022 = vsub.f32 %v225, %v1021
        %v1023 = vand.u32 %v1022, 4294901760
        %1024 = vmatpush1.msra.mxu0 %v1023
        %1025 = vmatprep.subr.mxu0 0.0
        %v1026 = vand.u32 %v226, 4294901760
        %v1027 = vsub.f32 %v226, %v1026
        %v1028 = vand.u32 %v1027, 4294901760
        %1029 = vmatpush1.msra.mxu0 %v1028
        %1030 = vmatprep.subr.mxu0 0.0
        %v1031 = vand.u32 %v227, 4294901760
        %v1032 = vsub.f32 %v227, %v1031
        %v1033 = vand.u32 %v1032, 4294901760
        %1034 = vmatpush1.msra.mxu0 %v1033
        %1035 = vmatprep.subr.mxu0 0.0
        %v1036 = vand.u32 %v228, 4294901760
        %v1037 = vsub.f32 %v228, %v1036
        %v1038 = vand.u32 %v1037, 4294901760
        %1039 = vmatpush1.msra.mxu0 %v1038
        %1040 = vmatprep.subr.mxu0 0.0
        %v1041 = vand.u32 %v229, 4294901760
        %v1042 = vsub.f32 %v229, %v1041
        %v1043 = vand.u32 %v1042, 4294901760
        %1044 = vmatpush1.msra.mxu0 %v1043
        %1045 = vmatprep.subr.mxu0 0.0
        %v1046 = vand.u32 %v230, 4294901760
        %v1047 = vsub.f32 %v230, %v1046
        %v1048 = vand.u32 %v1047, 4294901760
        %1049 = vmatpush1.msra.mxu0 %v1048
        %1050 = vmatprep.subr.mxu0 0.0
        %v1051 = vand.u32 %v231, 4294901760
        %v1052 = vsub.f32 %v231, %v1051
        %v1053 = vand.u32 %v1052, 4294901760
        %1054 = vmatpush1.msra.mxu0 %v1053
        %1055 = vmatprep.subr.mxu0 0.0
        %v1056 = vand.u32 %v232, 4294901760
        %v1057 = vsub.f32 %v232, %v1056
        %v1058 = vand.u32 %v1057, 4294901760
        %1059 = vmatpush1.msra.mxu0 %v1058
        %1060 = vmatprep.subr.mxu0 0.0
        %v1061 = vand.u32 %v233, 4294901760
        %v1062 = vsub.f32 %v233, %v1061
        %v1063 = vand.u32 %v1062, 4294901760
        %1064 = vmatpush1.msra.mxu0 %v1063
        %1065 = vmatprep.subr.mxu0 0.0
        %v1066 = vand.u32 %v234, 4294901760
        %v1067 = vsub.f32 %v234, %v1066
        %v1068 = vand.u32 %v1067, 4294901760
        %1069 = vmatpush1.msra.mxu0 %v1068
        %1070 = vmatprep.subr.mxu0 0.0
        %v1071 = vand.u32 %v235, 4294901760
        %v1072 = vsub.f32 %v235, %v1071
        %v1073 = vand.u32 %v1072, 4294901760
        %1074 = vmatpush1.msra.mxu0 %v1073
        %1075 = vmatprep.subr.mxu0 0.0
        %v1076 = vand.u32 %v236, 4294901760
        %v1077 = vsub.f32 %v236, %v1076
        %v1078 = vand.u32 %v1077, 4294901760
        %1079 = vmatpush1.msra.mxu0 %v1078
        %1080 = vmatprep.subr.mxu0 0.0
        %v1081 = vand.u32 %v237, 4294901760
        %v1082 = vsub.f32 %v237, %v1081
        %v1083 = vand.u32 %v1082, 4294901760
        %1084 = vmatpush1.msra.mxu0 %v1083
        %1085 = vmatprep.subr.mxu0 0.0
        %v1086 = vand.u32 %v238, 4294901760
        %v1087 = vsub.f32 %v238, %v1086
        %v1088 = vand.u32 %v1087, 4294901760
        %1089 = vmatpush1.msra.mxu0 %v1088
        %1090 = vmatprep.subr.mxu0 0.0
        %v1091 = vand.u32 %v239, 4294901760
        %v1092 = vsub.f32 %v239, %v1091
        %v1093 = vand.u32 %v1092, 4294901760
        %1094 = vmatpush1.msra.mxu0 %v1093
        %1095 = vmatprep.subr.mxu0 0.0
        %v1096 = vand.u32 %v240, 4294901760
        %v1097 = vsub.f32 %v240, %v1096
        %v1098 = vand.u32 %v1097, 4294901760
        %1099 = vmatpush1.msra.mxu0 %v1098
        %1100 = vmatprep.subr.mxu0 0.0
        %v1101 = vand.u32 %v241, 4294901760
        %v1102 = vsub.f32 %v241, %v1101
        %v1103 = vand.u32 %v1102, 4294901760
        %1104 = vmatpush1.msra.mxu0 %v1103
        %1105 = vmatprep.subr.mxu0 0.0
        %v1106 = vand.u32 %v242, 4294901760
        %v1107 = vsub.f32 %v242, %v1106
        %v1108 = vand.u32 %v1107, 4294901760
        %1109 = vmatpush1.msra.mxu0 %v1108
        %1110 = vmatprep.subr.mxu0 0.0
        %v1111 = vand.u32 %v243, 4294901760
        %v1112 = vsub.f32 %v243, %v1111
        %v1113 = vand.u32 %v1112, 4294901760
        %1114 = vmatpush1.msra.mxu0 %v1113
        %1115 = vmatprep.subr.mxu0 0.0
        %v1116 = vand.u32 %v244, 4294901760
        %v1117 = vsub.f32 %v244, %v1116
        %v1118 = vand.u32 %v1117, 4294901760
        %1119 = vmatpush1.msra.mxu0 %v1118
        %1120 = vmatprep.subr.mxu0 0.0
        %v1121 = vand.u32 %v245, 4294901760
        %v1122 = vsub.f32 %v245, %v1121
        %v1123 = vand.u32 %v1122, 4294901760
        %1124 = vmatpush1.msra.mxu0 %v1123
        %1125 = vmatprep.subr.mxu0 0.0
        %v1126 = vand.u32 %v246, 4294901760
        %v1127 = vsub.f32 %v246, %v1126
        %v1128 = vand.u32 %v1127, 4294901760
        %1129 = vmatpush1.msra.mxu0 %v1128
        %v1130 = vand.u32 %v208, 4294901760
        %1131 = vmatprep.mubr.f32.mxu0 %v1130
        %v1132 = vand.u32 %v207, 4294901760
        %1133 = vmatmul.mubr.f32.gmra.mrb[0].mxu0 %v1132
        %v1134 = vpop.f32.mrb[0].mxu0
        %v1135 = vadd.f32 %v934, %v1134
        %v1136 = vpop.f32.mrb[0].mxu0
        %v1137 = vand.u32 %v210, 4294901760
        %1138 = vmatprep.mubr.f32.mxu0 %v1137
        %v1139 = vand.u32 %v209, 4294901760
        %1140 = vmatmul.mubr.f32.gmra.mrb[0].mxu0 %v1139
        %v1141 = vpop.f32.mrb[0].mxu0
        %v1142 = vadd.f32 %v945, %v1141
        %v1143 = vpop.f32.mrb[0].mxu0
        %v1144 = vand.u32 %v212, 4294901760
        %1145 = vmatprep.mubr.f32.mxu0 %v1144
        %v1146 = vand.u32 %v211, 4294901760
        %1147 = vmatmul.mubr.f32.gmra.mrb[0].mxu0 %v1146
        %v1148 = vpop.f32.mrb[0].mxu0
        %v1149 = vadd.f32 %v956, %v1148
        %v1150 = vpop.f32.mrb[0].mxu0
        %v1151 = vand.u32 %v214, 4294901760
        %1152 = vmatprep.mubr.f32.mxu0 %v1151
        %v1153 = vand.u32 %v213, 4294901760
        %1154 = vmatmul.mubr.f32.gmra.mrb[0].mxu0 %v1153
        %v1155 = vpop.f32.mrb[0].mxu0
        %v1156 = vadd.f32 %v967, %v1155
        %v1157 = vpop.f32.mrb[0].mxu0
        %1158 = vdwg.mxu0
        %1159 = vmatprep.subr.mxu0 0.0
        %v1160 = vand.u32 %v215, 4294901760
        %1161 = vmatpush1.msra.mxu0 %v1160
        %1162 = vmatprep.subr.mxu0 0.0
        %v1163 = vand.u32 %v216, 4294901760
        %1164 = vmatpush1.msra.mxu0 %v1163
        %1165 = vmatprep.subr.mxu0 0.0
        %v1166 = vand.u32 %v217, 4294901760
        %1167 = vmatpush1.msra.mxu0 %v1166
        %1168 = vmatprep.subr.mxu0 0.0
        %v1169 = vand.u32 %v218, 4294901760
        %1170 = vmatpush1.msra.mxu0 %v1169
        %1171 = vmatprep.subr.mxu0 0.0
        %v1172 = vand.u32 %v219, 4294901760
        %1173 = vmatpush1.msra.mxu0 %v1172
        %1174 = vmatprep.subr.mxu0 0.0
        %v1175 = vand.u32 %v220, 4294901760
        %1176 = vmatpush1.msra.mxu0 %v1175
        %1177 = vmatprep.subr.mxu0 0.0
        %v1178 = vand.u32 %v221, 4294901760
        %1179 = vmatpush1.msra.mxu0 %v1178
        %1180 = vmatprep.subr.mxu0 0.0
        %v1181 = vand.u32 %v222, 4294901760
        %1182 = vmatpush1.msra.mxu0 %v1181
        %1183 = vmatprep.subr.mxu0 0.0
        %v1184 = vand.u32 %v223, 4294901760
        %1185 = vmatpush1.msra.mxu0 %v1184
        %1186 = vmatprep.subr.mxu0 0.0
        %v1187 = vand.u32 %v224, 4294901760
        %1188 = vmatpush1.msra.mxu0 %v1187
        %1189 = vmatprep.subr.mxu0 0.0
        %v1190 = vand.u32 %v225, 4294901760
        %1191 = vmatpush1.msra.mxu0 %v1190
        %1192 = vmatprep.subr.mxu0 0.0
        %v1193 = vand.u32 %v226, 4294901760
        %1194 = vmatpush1.msra.mxu0 %v1193
        %1195 = vmatprep.subr.mxu0 0.0
        %v1196 = vand.u32 %v227, 4294901760
        %1197 = vmatpush1.msra.mxu0 %v1196
        %1198 = vmatprep.subr.mxu0 0.0
        %v1199 = vand.u32 %v228, 4294901760
        %1200 = vmatpush1.msra.mxu0 %v1199
        %1201 = vmatprep.subr.mxu0 0.0
        %v1202 = vand.u32 %v229, 4294901760
        %1203 = vmatpush1.msra.mxu0 %v1202
        %1204 = vmatprep.subr.mxu0 0.0
        %v1205 = vand.u32 %v230, 4294901760
        %1206 = vmatpush1.msra.mxu0 %v1205
        %1207 = vmatprep.subr.mxu0 0.0
        %v1208 = vand.u32 %v231, 4294901760
        %1209 = vmatpush1.msra.mxu0 %v1208
        %1210 = vmatprep.subr.mxu0 0.0
        %v1211 = vand.u32 %v232, 4294901760
        %1212 = vmatpush1.msra.mxu0 %v1211
        %1213 = vmatprep.subr.mxu0 0.0
        %v1214 = vand.u32 %v233, 4294901760
        %1215 = vmatpush1.msra.mxu0 %v1214
        %1216 = vmatprep.subr.mxu0 0.0
        %v1217 = vand.u32 %v234, 4294901760
        %1218 = vmatpush1.msra.mxu0 %v1217
        %1219 = vmatprep.subr.mxu0 0.0
        %v1220 = vand.u32 %v235, 4294901760
        %1221 = vmatpush1.msra.mxu0 %v1220
        %1222 = vmatprep.subr.mxu0 0.0
        %v1223 = vand.u32 %v236, 4294901760
        %1224 = vmatpush1.msra.mxu0 %v1223
        %1225 = vmatprep.subr.mxu0 0.0
        %v1226 = vand.u32 %v237, 4294901760
        %1227 = vmatpush1.msra.mxu0 %v1226
        %1228 = vmatprep.subr.mxu0 0.0
        %v1229 = vand.u32 %v238, 4294901760
        %1230 = vmatpush1.msra.mxu0 %v1229
        %1231 = vmatprep.subr.mxu0 0.0
        %v1232 = vand.u32 %v239, 4294901760
        %1233 = vmatpush1.msra.mxu0 %v1232
        %1234 = vmatprep.subr.mxu0 0.0
        %v1235 = vand.u32 %v240, 4294901760
        %1236 = vmatpush1.msra.mxu0 %v1235
        %1237 = vmatprep.subr.mxu0 0.0
        %v1238 = vand.u32 %v241, 4294901760
        %1239 = vmatpush1.msra.mxu0 %v1238
        %1240 = vmatprep.subr.mxu0 0.0
        %v1241 = vand.u32 %v242, 4294901760
        %1242 = vmatpush1.msra.mxu0 %v1241
        %1243 = vmatprep.subr.mxu0 0.0
        %v1244 = vand.u32 %v243, 4294901760
        %1245 = vmatpush1.msra.mxu0 %v1244
        %1246 = vmatprep.subr.mxu0 0.0
        %v1247 = vand.u32 %v244, 4294901760
        %1248 = vmatpush1.msra.mxu0 %v1247
        %1249 = vmatprep.subr.mxu0 0.0
        %v1250 = vand.u32 %v245, 4294901760
        %1251 = vmatpush1.msra.mxu0 %v1250
        %1252 = vmatprep.subr.mxu0 0.0
        %v1253 = vand.u32 %v246, 4294901760
        %1254 = vmatpush1.msra.mxu0 %v1253
        %v1255 = vand.u32 %v208, 4294901760
        %1256 = vmatprep.mubr.f32.mxu0 %v1255
        %v1257 = vand.u32 %v207, 4294901760
        %1258 = vmatmul.mubr.f32.gmra.mrb[0].mxu0 %v1257
        %v1259 = vpop.f32.mrb[0].mxu0
        %v1260 = vadd.f32 %v1135, %v1259
        %v1261 = vpop.f32.mrb[0].mxu0
        %v1262 = vand.u32 %v210, 4294901760
        %1263 = vmatprep.mubr.f32.mxu0 %v1262
        %v1264 = vand.u32 %v209, 4294901760
        %1265 = vmatmul.mubr.f32.gmra.mrb[0].mxu0 %v1264
        %v1266 = vpop.f32.mrb[0].mxu0
        %v1267 = vadd.f32 %v1142, %v1266
        %v1268 = vpop.f32.mrb[0].mxu0
        %v1269 = vand.u32 %v212, 4294901760
        %1270 = vmatprep.mubr.f32.mxu0 %v1269
        %v1271 = vand.u32 %v211, 4294901760
        %1272 = vmatmul.mubr.f32.gmra.mrb[0].mxu0 %v1271
        %v1273 = vpop.f32.mrb[0].mxu0
        %v1274 = vadd.f32 %v1149, %v1273
        %v1275 = vpop.f32.mrb[0].mxu0
        %v1276 = vand.u32 %v214, 4294901760
        %1277 = vmatprep.mubr.f32.mxu0 %v1276
        %v1278 = vand.u32 %v213, 4294901760
        %1279 = vmatmul.mubr.f32.gmra.mrb[0].mxu0 %v1278
        %v1280 = vpop.f32.mrb[0].mxu0
        %v1281 = vadd.f32 %v1156, %v1280
        %v1282 = vpop.f32.mrb[0].mxu0
        %1283 = vdwg.mxu0
        %1284 = vst [vmem:[%s204] sm:$0xff] %v1260
        %1285 = vst [vmem:[%s204 + $0x8] sm:$0xff] %v1267
        %1286 = vst [vmem:[%s204 + $0x10] sm:$0xff] %v1274
        %1287 = vst [vmem:[%s204 + $0x18] sm:$0xff] %v1281
        %s1288 = sand.u32 %s97, 1
        %s1289 = scalar_lea.sflag [#allocation4], %s1288
        %s1290 = sand.u32 %s97, 1
        %s1291 = smul.addr %s1290, 32
        %s1292 = scalar_lea.vmem [#allocation7], %s1291
        // Predicated region
        $region41: #{tpu_custom_call.1} parent=31 // pred_check
          %p1293 = pneg %p107
        $region42: #{tpu_custom_call.1} parent=31 // pred_check_branch
          %1295 = sbr.rel (%p1293) target = $region44
        $region43: #{tpu_custom_call.1} parent=31 // pred_region
          %s1296 = smul.u32 4, %s21
          %s1298 = ssub.s32 512, 512
          %1299 = vsyncadd %s1289, %s1298
          %s1300 = smul.addr %s1296, 128
          %s1301 = scalar_lea.hbm %s3, %s1300
          %s1302 = sshll.u32 %s1292, 4
          %s1303 = int_to_ptr.vmem [resolvable:$true] %s1302
          %1308 = dma.vmem_to_hbm [thread:$0]  %s1303, 512, %s1301, %s1289, 128, 128, 8
        $region44: #{tpu_custom_call.1} parent=31 // pred_fallthru
          _
      $region32: #{tpu_custom_call.1} parent=5 // pred_fallthru
        _
      %p1309 = scmp.le.s32.totalorder 2, %s16
      // Predicated region
      $region45: #{tpu_custom_call.1} parent=5 // pred_check
        %p1310 = pneg %p1309
      $region46: #{tpu_custom_call.1} parent=5 // pred_check_branch
        %1312 = sbr.rel (%p1310) target = $region48
      $region47: #{tpu_custom_call.1} parent=5 // pred_region
        %s1313 = ssub.s32 %s16, 2
        // Predicated region
        $region49: #{tpu_custom_call.1} parent=47 // pred_check
          %p1314 = pneg %p113
        $region50: #{tpu_custom_call.1} parent=47 // pred_check_branch
          %1316 = sbr.rel (%p1314) target = $region52
        $region51: #{tpu_custom_call.1} parent=47 // pred_region
          %s1317 = sand.u32 %s98, 1
          %s1318 = scalar_lea.sflag [#allocation4], %s1317
          %s1319 = sand.u32 %s98, 1
          %s1320 = smul.addr %s1319, 32
          %s1321 = scalar_lea.vmem [#allocation7], %s1320
          %1322 = dma.done %s1318, 512
        $region52: #{tpu_custom_call.1} parent=47 // pred_fallthru
          _
      $region48: #{tpu_custom_call.1} parent=5 // pred_fallthru
        _
    $region6: #{tpu_custom_call.1} parent=1 // loop_footer
      %s20 = sadd.s32 1, %s16
    $region7: #{tpu_custom_call.1} parent=1 // loop_footer_branch
      %15 = sbr.rel target = $region3
    $region8: #{tpu_custom_call.1} parent=1 // loop_exit
      _
    %1323 = vsyncpa [#allocation3], 1
    %s1324 = scalar_lea.sflag [#allocation3], 1
    %1325 = vsyncpa %s1324, 1
    %1326 = vsyncpa [#allocation6], 1
    %1327 = vsyncpa [#allocation4], 1
    %s1328 = scalar_lea.sflag [#allocation4], 1
    %1329 = vsyncpa %s1328, 1

</llo_original>
